<compile_context>
chip_gen: v6e
topology: v6e:2x2x1
jax: 0.10.0
libtpu: 0.0.40
codegen_flags: <defaults>
</compile_context>

<pallas_src>
import functools

import jax
import jax.numpy as jnp
from jax.experimental import pallas as pl
from jax.experimental.pallas import tpu as pltpu


def _round_up(x, m):
    return (x + m - 1) // m * m


def _resident_spec(shape):
    """Full-extent block, constant index map, single-buffered (shared params)."""
    idx = lambda g: (0,) * len(shape)
    try:  # pipeline_mode / pl.Buffered are recent additions; degrade gracefully
        return pl.BlockSpec(shape, idx, pipeline_mode=pl.Buffered(1))
    except (TypeError, AttributeError):
        return pl.BlockSpec(shape, idx)


def actor_kernel(x_ref, w1_ref, w2_ref, w3_ref, b1_ref, b2_ref, b3_ref, out_ref,
                 *, groups_per_step, batch_pad, valid_rows):
    """One grid step = `groups_per_step` independent actor evaluations packed
    into a single (groups_per_step * batch_pad)-row matmul per layer."""
    cdt = w1_ref.dtype                      # f32, or bf16 on the bf16 path

    x = x_ref[...]                          # (gc*B_pad, d_in), already in cdt
    # fc1 + ReLU (MXU f32 accumulate; bias add / ReLU on the VPU in f32)
    h = jnp.dot(x, w1_ref[...], preferred_element_type=jnp.float32) + b1_ref[...]
    h = jnp.maximum(h, 0.0)
    # fc2 + ReLU
    h = jnp.dot(h.astype(cdt), w2_ref[...],
                preferred_element_type=jnp.float32) + b2_ref[...]
    h = jnp.maximum(h, 0.0)
    # pi (logits)
    logits = jnp.dot(h.astype(cdt), w3_ref[...],
                     preferred_element_type=jnp.float32) + b3_ref[...]

    # softmax over dim=0 (batch axis) *within each group*.  The reshape is
    # layout-preserving: batch_pad % 8 == 0 and the lane dim % 128 == 0.
    a_pad = logits.shape[-1]
    lg = logits.reshape(groups_per_step, batch_pad, a_pad)
    if valid_rows < batch_pad:              # mask zero-padded batch rows
        row = jax.lax.broadcasted_iota(jnp.int32, lg.shape, 1)
        lg = jnp.where(row < valid_rows, lg, -jnp.inf)
    m = jnp.max(lg, axis=1, keepdims=True)
    e = jnp.exp(lg - m)
    s = jnp.sum(e, axis=1, keepdims=True)
    # exact divide -> columns sum to 1 exactly (VPU has slack here)
    out_ref[...] = (e / s).astype(out_ref.dtype)


def pack_params(params, param_dtype=jnp.float32):
    """Per-dimension padding (not a uniform P): w1 [d_in, H_pad],
    w2 [H_pad, H_pad], w3 [H_pad, A_pad]; biases stay f32.  Zero padding is
    semantically inert (0-cols contribute 0, ReLU(0)=0; padded lanes are
    sliced off outside).  param_dtype=jnp.bfloat16 selects the bf16 path."""
    w1, b1, w2, b2, w3, b3 = params
    d_in, hidden = w1.shape
    n_actions = w3.shape[1]
    H_pad = _round_up(hidden, 128)
    A_pad = _round_up(n_actions, 128)

    def pad_w(w, rows, cols):
        slab = jnp.zeros((rows, cols), param_dtype)
        return slab.at[:w.shape[0], :w.shape[1]].set(w.astype(param_dtype))

    def pad_b(b, cols):
        b = b.reshape(1, -1).astype(jnp.float32)
        return jnp.zeros((1, cols), jnp.float32).at[:, :b.shape[1]].set(b)

    return dict(
        w1=pad_w(w1, d_in, H_pad),          # contraction dim left unpadded
        w2=pad_w(w2, H_pad, H_pad),
        w3=pad_w(w3, H_pad, A_pad),
        b1=pad_b(b1, H_pad), b2=pad_b(b2, H_pad), b3=pad_b(b3, A_pad),
        d_in=d_in, n_actions=n_actions, H_pad=H_pad, A_pad=A_pad,
    )


def actor_forward(state, packed, *, target_rows=512):
    """state: [B, input_dims] or [G, B, input_dims] (G independent actor
    evaluations).  Softmax is over the batch axis within each group (dim=0 of
    the original module).  Groups are packed `gc` per grid step (>=2 steps kept
    when possible so v7x can use both TensorCores)."""
    w1, w2, w3 = packed["w1"], packed["w2"], packed["w3"]
    b1, b2, b3 = packed["b1"], packed["b2"], packed["b3"]
    d_in, n_actions = packed["d_in"], packed["n_actions"]
    H_pad, A_pad = packed["H_pad"], packed["A_pad"]

    squeeze = state.ndim == 2
    if squeeze:
        state = state[None]
    G, B, din = state.shape
    assert din == d_in and B >= 1

    B_pad = _round_up(max(B, 8), 8)

    # --- group packing: many groups per grid step -> big M per matmul -------
    gc = max(1, target_rows // B_pad)        # aim for ~target_rows rows/step
    gc = min(gc, G)
    if G >= 2:                               # keep >= 2 steps for v7x megacore
        gc = min(gc, -(-G // 2))
    n_steps = -(-G // gc)
    G_pad = n_steps * gc

    cdt = w1.dtype                           # compute / activation dtype
    if (G_pad, B_pad) == (G, B):
        x2d = state.astype(cdt).reshape(G * B, d_in)    # no padded HBM slab
    else:
        x = jnp.zeros((G_pad, B_pad, d_in), cdt)
        x = x.at[:G, :B, :].set(state.astype(cdt))
        x2d = x.reshape(G_pad * B_pad, d_in)

    rows = G_pad * B_pad
    rows_per_step = gc * B_pad
    flops = 2 * rows * (d_in * H_pad + H_pad * H_pad + H_pad * A_pad)
    bytes_accessed = int(
        x2d.size * x2d.dtype.itemsize
        + sum(w.size * w.dtype.itemsize for w in (w1, w2, w3))
        + sum(b.size * b.dtype.itemsize for b in (b1, b2, b3))
        + rows * A_pad * 4)

    kernel = functools.partial(actor_kernel, groups_per_step=gc,
                               batch_pad=B_pad, valid_rows=B)

    out = pl.pallas_call(
        kernel,
        out_shape=jax.ShapeDtypeStruct((G_pad, B_pad, A_pad), jnp.float32),
        grid=(n_steps,),
        in_specs=[
            # state block: sublane dim % 8 == 0, lane dim == full extent
            pl.BlockSpec((rows_per_step, d_in), lambda g: (g, 0)),
            _resident_spec((d_in, H_pad)),   # w1 (shared, single-buffered)
            _resident_spec((H_pad, H_pad)),  # w2
            _resident_spec((H_pad, A_pad)),  # w3
            _resident_spec((1, H_pad)),      # b1
            _resident_spec((1, H_pad)),      # b2
            _resident_spec((1, A_pad)),      # b3
        ],
        out_specs=pl.BlockSpec((gc, B_pad, A_pad), lambda g: (g, 0, 0)),
        compiler_params=pltpu.CompilerParams(
            dimension_semantics=("parallel",)),
        cost_estimate=pl.CostEstimate(
            flops=flops, transcendentals=rows * A_pad,
            bytes_accessed=bytes_accessed),
    )(x2d, w1, w2, w3, b1, b2, b3)

    out = out[:G, :B, :n_actions]
    return out[0] if squeeze else out


def init_params(key, input_dims, hidden_dim, n_actions):
    """torch.nn.Linear default init (U[-1/sqrt(fan_in), +]); W stored [in, out]."""
    def linear(k, fan_in, fan_out):
        kw, kb = jax.random.split(k)
        bound = 1.0 / jnp.sqrt(fan_in)
        w = jax.random.uniform(kw, (fan_in, fan_out), jnp.float32, -bound, bound)
        b = jax.random.uniform(kb, (1, fan_out), jnp.float32, -bound, bound)
        return w, b

    k1, k2, k3 = jax.random.split(key, 3)
    w1, b1 = linear(k1, input_dims, hidden_dim)
    w2, b2 = linear(k2, hidden_dim, hidden_dim)
    w3, b3 = linear(k3, hidden_dim, n_actions)
    return (w1, b1, w2, b2, w3, b3)


def reference_forward(state, params):
    w1, b1, w2, b2, w3, b3 = params
    h1 = jnp.maximum(state @ w1 + b1, 0.0)
    h2 = jnp.maximum(h1 @ w2 + b2, 0.0)
    logits = h2 @ w3 + b3
    return jax.nn.softmax(logits, axis=0)   # dim=0, same as the PyTorch module


if __name__ == "__main__":
    key = jax.random.PRNGKey(0)
    k_params, k_state, k_stack, k_odd = jax.random.split(key, 4)

    batch, input_dims, hidden_dim, n_actions = 64, 32, 64, 16

    params = init_params(k_params, input_dims, hidden_dim, n_actions)
    state = jax.random.normal(k_state, (batch, input_dims), jnp.float32)
    ref = reference_forward(state, params)

    # --- f32 path: tight match against the pure-JAX reference --------------
    packed_f32 = pack_params(params, jnp.float32)
    out = jax.block_until_ready(actor_forward(state, packed_f32))
    assert out.shape == (batch, n_actions)
    assert jnp.allclose(out, ref, atol=2e-3, rtol=2e-3), "f32 mismatch vs reference"
    assert jnp.allclose(out.sum(axis=0), 1.0, atol=1e-3)   # exact divide -> exact norm

    # --- stacked path: G independent evaluations packed into 2 grid steps --
    G = 4
    states = jax.random.normal(k_stack, (G, batch, input_dims), jnp.float32)
    outs = jax.block_until_ready(actor_forward(states, packed_f32))
    refs = jnp.stack([reference_forward(states[g], params) for g in range(G)])
    assert outs.shape == (G, batch, n_actions)
    assert jnp.allclose(outs, refs, atol=2e-3, rtol=2e-3), "stacked mismatch"

    # --- ragged batch (exercises padded-row masking in the softmax) --------
    odd_b = 13
    state_odd = jax.random.normal(k_odd, (odd_b, input_dims), jnp.float32)
    out_odd = jax.block_until_ready(actor_forward(state_odd, packed_f32))
    ref_odd = reference_forward(state_odd, params)
    assert jnp.allclose(out_odd, ref_odd, atol=2e-3, rtol=2e-3), "odd-batch mismatch"

    # --- bf16 weights + activations (v5e-friendly); f32 accumulate/softmax -
    packed_bf16 = pack_params(params, jnp.bfloat16)
    out_bf16 = jax.block_until_ready(actor_forward(state, packed_bf16))
    assert out_bf16.shape == (batch, n_actions)
    assert jnp.allclose(out_bf16.sum(axis=0), 1.0, atol=1e-3)
    assert jnp.allclose(out_bf16, ref, atol=5e-2), "bf16 path diverged too far"

    print("KERNEL_OK")
</pallas_src>

<mosaic_0001>
module attributes {stable_mosaic.version = 11 : i64} {
  func.func @actor_kernel(%arg0: i32, %arg1: memref<64x32xf32, #tpu.memory_space<vmem>>, %arg2: memref<32x128xf32, #tpu.memory_space<vmem>>, %arg3: memref<128x128xf32, #tpu.memory_space<vmem>>, %arg4: memref<128x128xf32, #tpu.memory_space<vmem>>, %arg5: memref<1x128xf32, #tpu.memory_space<vmem>>, %arg6: memref<1x128xf32, #tpu.memory_space<vmem>>, %arg7: memref<1x128xf32, #tpu.memory_space<vmem>>, %arg8: memref<1x64x128xf32, #tpu.memory_space<vmem>>) attributes {dimension_semantics = [#tpu.dimension_semantics<parallel>], iteration_bounds = array<i64: 1>, scalar_prefetch = 0 : i64, scratch_operands = 0 : i64, tpu.core_type = #tpu.core_type<tc>, window_params = [{transform_indices = @transform_0, window_bounds = array<i64: 64, 32>}, {pipeline_mode = #tpu.pipeline_mode<synchronous>, transform_indices = @transform_1, window_bounds = array<i64: 32, 128>}, {pipeline_mode = #tpu.pipeline_mode<synchronous>, transform_indices = @transform_2, window_bounds = array<i64: 128, 128>}, {pipeline_mode = #tpu.pipeline_mode<synchronous>, transform_indices = @transform_3, window_bounds = array<i64: 128, 128>}, {pipeline_mode = #tpu.pipeline_mode<synchronous>, transform_indices = @transform_4, window_bounds = array<i64: 1, 128>}, {pipeline_mode = #tpu.pipeline_mode<synchronous>, transform_indices = @transform_5, window_bounds = array<i64: 1, 128>}, {pipeline_mode = #tpu.pipeline_mode<synchronous>, transform_indices = @transform_6, window_bounds = array<i64: 1, 128>}, {transform_indices = @transform_7, window_bounds = array<i64: 1, 64, 128>}]} {
    %c0 = arith.constant 0 : index
    %c0_0 = arith.constant 0 : index
    %0 = vector.load %arg1[%c0, %c0_0] : memref<64x32xf32, #tpu.memory_space<vmem>>, vector<64x32xf32>
    %c0_1 = arith.constant 0 : index
    %c0_2 = arith.constant 0 : index
    %1 = vector.load %arg2[%c0_1, %c0_2] : memref<32x128xf32, #tpu.memory_space<vmem>>, vector<32x128xf32>
    %cst = arith.constant dense<0.000000e+00> : vector<64x128xf32>
    %2 = tpu.matmul %0, %1, %cst {dimension_numbers = #tpu.dot_dimension_numbers<[1], [0], [0], [1], [0, 0, 1, 1], [], []>} : vector<64x32xf32>, vector<32x128xf32>, vector<64x128xf32> -> vector<64x128xf32>
    %c0_3 = arith.constant 0 : index
    %c0_4 = arith.constant 0 : index
    %3 = vector.load %arg5[%c0_3, %c0_4] : memref<1x128xf32, #tpu.memory_space<vmem>>, vector<1x128xf32>
    %4 = vector.broadcast %3 : vector<1x128xf32> to vector<64x128xf32>
    %5 = arith.addf %2, %4 : vector<64x128xf32>
    %cst_5 = arith.constant 0.000000e+00 : f32
    %6 = vector.broadcast %cst_5 : f32 to vector<64x128xf32>
    %7 = arith.maximumf %5, %6 : vector<64x128xf32>
    %c0_6 = arith.constant 0 : index
    %c0_7 = arith.constant 0 : index
    %8 = vector.load %arg3[%c0_6, %c0_7] : memref<128x128xf32, #tpu.memory_space<vmem>>, vector<128x128xf32>
    %cst_8 = arith.constant dense<0.000000e+00> : vector<64x128xf32>
    %9 = tpu.matmul %7, %8, %cst_8 {dimension_numbers = #tpu.dot_dimension_numbers<[1], [0], [0], [1], [0, 0, 1, 1], [], []>} : vector<64x128xf32>, vector<128x128xf32>, vector<64x128xf32> -> vector<64x128xf32>
    %c0_9 = arith.constant 0 : index
    %c0_10 = arith.constant 0 : index
    %10 = vector.load %arg6[%c0_9, %c0_10] : memref<1x128xf32, #tpu.memory_space<vmem>>, vector<1x128xf32>
    %11 = vector.broadcast %10 : vector<1x128xf32> to vector<64x128xf32>
    %12 = arith.addf %9, %11 : vector<64x128xf32>
    %cst_11 = arith.constant 0.000000e+00 : f32
    %13 = vector.broadcast %cst_11 : f32 to vector<64x128xf32>
    %14 = arith.maximumf %12, %13 : vector<64x128xf32>
    %c0_12 = arith.constant 0 : index
    %c0_13 = arith.constant 0 : index
    %15 = vector.load %arg4[%c0_12, %c0_13] : memref<128x128xf32, #tpu.memory_space<vmem>>, vector<128x128xf32>
    %cst_14 = arith.constant dense<0.000000e+00> : vector<64x128xf32>
    %16 = tpu.matmul %14, %15, %cst_14 {dimension_numbers = #tpu.dot_dimension_numbers<[1], [0], [0], [1], [0, 0, 1, 1], [], []>} : vector<64x128xf32>, vector<128x128xf32>, vector<64x128xf32> -> vector<64x128xf32>
    %c0_15 = arith.constant 0 : index
    %c0_16 = arith.constant 0 : index
    %17 = vector.load %arg7[%c0_15, %c0_16] : memref<1x128xf32, #tpu.memory_space<vmem>>, vector<1x128xf32>
    %18 = vector.broadcast %17 : vector<1x128xf32> to vector<64x128xf32>
    %19 = arith.addf %16, %18 : vector<64x128xf32>
    %20 = vector.shape_cast %19 : vector<64x128xf32> to vector<1x64x128xf32>
    %cst_17 = arith.constant dense<0xFF800000> : vector<1x128xf32>
    %21 = vector.multi_reduction <maximumf>, %20, %cst_17 [1] : vector<1x64x128xf32> to vector<1x128xf32>
    %22 = vector.shape_cast %21 : vector<1x128xf32> to vector<1x1x128xf32>
    %23 = vector.broadcast %22 : vector<1x1x128xf32> to vector<1x64x128xf32>
    %24 = arith.subf %20, %23 : vector<1x64x128xf32>
    %25 = math.exp %24 : vector<1x64x128xf32>
    %cst_18 = arith.constant dense<0.000000e+00> : vector<1x128xf32>
    %26 = vector.multi_reduction <add>, %25, %cst_18 [1] : vector<1x64x128xf32> to vector<1x128xf32>
    %27 = vector.shape_cast %26 : vector<1x128xf32> to vector<1x1x128xf32>
    %28 = vector.broadcast %27 : vector<1x1x128xf32> to vector<1x64x128xf32>
    %29 = arith.divf %25, %28 : vector<1x64x128xf32>
    %c0_19 = arith.constant 0 : index
    %c0_20 = arith.constant 0 : index
    %c0_21 = arith.constant 0 : index
    %30 = vector.load %arg8[%c0_19, %c0_20, %c0_21] : memref<1x64x128xf32, #tpu.memory_space<vmem>>, vector<1x64x128xf32>
    tpu.vector_store %arg8[%c0_19, %c0_20, %c0_21], %29 {strides = array<i32>} : memref<1x64x128xf32, #tpu.memory_space<vmem>>, vector<1x64x128xf32>,
    return
  }
  func.func @transform_0(%arg0: i32) -> (i32, i32) {
    %c0_i32 = arith.constant 0 : i32
    %c0_i32_0 = arith.constant 0 : i32
    return %arg0, %c0_i32 : i32, i32
  }
  func.func @transform_1(%arg0: i32) -> (i32, i32) {
    %c0_i32 = arith.constant 0 : i32
    %c0_i32_0 = arith.constant 0 : i32
    %c0_i32_1 = arith.constant 0 : i32
    return %c0_i32, %c0_i32_0 : i32, i32
  }
  func.func @transform_2(%arg0: i32) -> (i32, i32) {
    %c0_i32 = arith.constant 0 : i32
    %c0_i32_0 = arith.constant 0 : i32
    %c0_i32_1 = arith.constant 0 : i32
    return %c0_i32, %c0_i32_0 : i32, i32
  }
  func.func @transform_3(%arg0: i32) -> (i32, i32) {
    %c0_i32 = arith.constant 0 : i32
    %c0_i32_0 = arith.constant 0 : i32
    %c0_i32_1 = arith.constant 0 : i32
    return %c0_i32, %c0_i32_0 : i32, i32
  }
  func.func @transform_4(%arg0: i32) -> (i32, i32) {
    %c0_i32 = arith.constant 0 : i32
    %c0_i32_0 = arith.constant 0 : i32
    %c0_i32_1 = arith.constant 0 : i32
    return %c0_i32, %c0_i32_0 : i32, i32
  }
  func.func @transform_5(%arg0: i32) -> (i32, i32) {
    %c0_i32 = arith.constant 0 : i32
    %c0_i32_0 = arith.constant 0 : i32
    %c0_i32_1 = arith.constant 0 : i32
    return %c0_i32, %c0_i32_0 : i32, i32
  }
  func.func @transform_6(%arg0: i32) -> (i32, i32) {
    %c0_i32 = arith.constant 0 : i32
    %c0_i32_0 = arith.constant 0 : i32
    %c0_i32_1 = arith.constant 0 : i32
    return %c0_i32, %c0_i32_0 : i32, i32
  }
  func.func @transform_7(%arg0: i32) -> (i32, i32, i32) {
    %c0_i32 = arith.constant 0 : i32
    %c0_i32_0 = arith.constant 0 : i32
    %c0_i32_1 = arith.constant 0 : i32
    return %arg0, %c0_i32, %c0_i32_0 : i32, i32, i32
  }
}

</mosaic_0001>

<llo_original>
// kernel: tpu_custom_call.1
$region0: #{tpu_custom_call.1}
  #allocation0 [shape = 'u32[]', space=smem, size = 0x4, offset = 0x4, fixed_abs, tag = 'smem constant byte address 0x4 - core index']
  #allocation1 [shape = 'u32[144,128]{1,0:T(1,128)}', space=vmem, size = 0x12000, scoped, tag = 'internal scratch']
  %s0 = inlined_call_operand.vmem [shape: f32[64,32], index: 0, kind: input, shape index: {}]
  %s1 = inlined_call_operand.vmem [shape: f32[32,128], index: 1, kind: input, shape index: {}]
  %s2 = inlined_call_operand.hbm [shape: f32[128,128], index: 2, kind: input, shape index: {}]
  %s3 = inlined_call_operand.hbm [shape: f32[128,128], index: 3, kind: input, shape index: {}]
  %s4 = inlined_call_operand.vmem [shape: f32[1,128], index: 4, kind: input, shape index: {}]
  %s5 = inlined_call_operand.vmem [shape: f32[1,128], index: 5, kind: input, shape index: {}]
  %s6 = inlined_call_operand.vmem [shape: f32[1,128], index: 6, kind: input, shape index: {}]
  %s7 = inlined_call_operand.hbm [shape: f32[1,64,128], index: 7, kind: output, shape index: {}]
  %s8 = sld [smem:[#allocation0]]
  $region46: #{tpu_custom_call.1} parent=0
    _
  %s10 = ssub.s32 1, %s8
  %s11 = scalar_select 0, %s10, %s8
  $region1: #{tpu_custom_call.1} parent=0
    #allocation2 [shape = 'u8[65536]{0}', space=vmem, size = 0x10000, scoped, tag = 'input window, operand 2, single buffered']
    #allocation3 [shape = 's32[1]{0}', space=sflag, size = 0x4, scoped, tag = 'scoped memory for tpu_custom_call.1']
    #allocation4 [shape = 's32[1]{0}', space=sflag, size = 0x4, scoped, tag = 'scoped memory for tpu_custom_call.1']
    #allocation5 [shape = 'u8[65536]{0}', space=vmem, size = 0x10000, scoped, tag = 'input window, operand 3, single buffered']
    #allocation6 [shape = 's32[1]{0}', space=sflag, size = 0x4, scoped, tag = 'scoped memory for tpu_custom_call.1']
    #allocation7 [shape = 'u8[32768]{0}', space=vmem, size = 0x8000, scoped, tag = 'output window, operand 0, single buffered']
    %12 = vsyncpa [#allocation3], 0
    %13 = vsyncpa [#allocation6], 0
    %14 = vsyncpa [#allocation4], 0
    // Predicated region
    $region2: #{tpu_custom_call.1} parent=1 // pred_check
      _
    $region3: #{tpu_custom_call.1} parent=1 // pred_check_branch
      %16 = sbr.rel (0) target = $region5
    $region4: #{tpu_custom_call.1} parent=1 // pred_region
      _
    $region5: #{tpu_custom_call.1} parent=1 // pred_fallthru
      _
    // Predicated region
    $region6: #{tpu_custom_call.1} parent=1 // pred_check
      _
    $region7: #{tpu_custom_call.1} parent=1 // pred_check_branch
      %18 = sbr.rel (0) target = $region9
    $region8: #{tpu_custom_call.1} parent=1 // pred_region
      _
    $region9: #{tpu_custom_call.1} parent=1 // pred_fallthru
      _
    // Predicated region
    $region10: #{tpu_custom_call.1} parent=1 // pred_check
      _
    $region11: #{tpu_custom_call.1} parent=1 // pred_check_branch
      %20 = sbr.rel (0) target = $region13
    $region12: #{tpu_custom_call.1} parent=1 // pred_region
      %s22 = ssub.s32 2048, 2048
      %23 = vsyncadd [#allocation3], %s22
      %s24 = sshll.u32 [#allocation2], 4
      %s25 = int_to_ptr.vmem [resolvable:$true] %s24
      %30 = dma.hbm_to_vmem [thread:$0]  %s2, 2048, %s25, [#allocation3], 128, 128, 8
    $region13: #{tpu_custom_call.1} parent=1 // pred_fallthru
      _
    // Predicated region
    $region14: #{tpu_custom_call.1} parent=1 // pred_check
      _
    $region15: #{tpu_custom_call.1} parent=1 // pred_check_branch
      %32 = sbr.rel (0) target = $region17
    $region16: #{tpu_custom_call.1} parent=1 // pred_region
      %s34 = ssub.s32 2048, 2048
      %35 = vsyncadd [#allocation6], %s34
      %s36 = sshll.u32 [#allocation5], 4
      %s37 = int_to_ptr.vmem [resolvable:$true] %s36
      %42 = dma.hbm_to_vmem [thread:$0]  %s3, 2048, %s37, [#allocation6], 128, 128, 8
    $region17: #{tpu_custom_call.1} parent=1 // pred_fallthru
      _
    // Predicated region
    $region18: #{tpu_custom_call.1} parent=1 // pred_check
      _
    $region19: #{tpu_custom_call.1} parent=1 // pred_check_branch
      %44 = sbr.rel (0) target = $region21
    $region20: #{tpu_custom_call.1} parent=1 // pred_region
      _
    $region21: #{tpu_custom_call.1} parent=1 // pred_fallthru
      _
    // Predicated region
    $region22: #{tpu_custom_call.1} parent=1 // pred_check
      _
    $region23: #{tpu_custom_call.1} parent=1 // pred_check_branch
      %46 = sbr.rel (0) target = $region25
    $region24: #{tpu_custom_call.1} parent=1 // pred_region
      _
    $region25: #{tpu_custom_call.1} parent=1 // pred_fallthru
      _
    // Predicated region
    $region26: #{tpu_custom_call.1} parent=1 // pred_check
      _
    $region27: #{tpu_custom_call.1} parent=1 // pred_check_branch
      %48 = sbr.rel (0) target = $region29
    $region28: #{tpu_custom_call.1} parent=1 // pred_region
      _
    $region29: #{tpu_custom_call.1} parent=1 // pred_fallthru
      _
    // Predicated region
    $region30: #{tpu_custom_call.1} parent=1 // pred_check
      _
    $region31: #{tpu_custom_call.1} parent=1 // pred_check_branch
      %50 = sbr.rel (0) target = $region33
    $region32: #{tpu_custom_call.1} parent=1 // pred_region
      %51 = dma.done [#allocation3], 2048
    $region33: #{tpu_custom_call.1} parent=1 // pred_fallthru
      _
    // Predicated region
    $region34: #{tpu_custom_call.1} parent=1 // pred_check
      _
    $region35: #{tpu_custom_call.1} parent=1 // pred_check_branch
      %53 = sbr.rel (0) target = $region37
    $region36: #{tpu_custom_call.1} parent=1 // pred_region
      %54 = dma.done [#allocation6], 2048
    $region37: #{tpu_custom_call.1} parent=1 // pred_fallthru
      _
    %v55 = vld [vmem:[%s0] sm:$0xff]
    %v56 = vld [vmem:[%s0 + $0x8] sm:$0xff]
    %v57 = vld [vmem:[%s0 + $0x10] sm:$0xff]
    %v58 = vld [vmem:[%s0 + $0x18] sm:$0xff]
    %v59 = vld [vmem:[%s0 + $0x20] sm:$0xff]
    %v60 = vld [vmem:[%s0 + $0x28] sm:$0xff]
    %v61 = vld [vmem:[%s0 + $0x30] sm:$0xff]
    %v62 = vld [vmem:[%s0 + $0x38] sm:$0xff]
    %v63 = vld [vmem:[%s1] sm:$0xff]
    %v64 = vld [vmem:[%s1 + $0x8] sm:$0xff]
    %v65 = vld [vmem:[%s1 + $0x10] sm:$0xff]
    %v66 = vld [vmem:[%s1 + $0x18] sm:$0xff]
    %v67 = vld [vmem:[%s4] sm:$0x1]
    %v69 = vlaneseq
    %v70 = vshrl.u32 %v69, 7
    %v71 = vsub.s32 0, %v70
    %v72 = vrot.slane %v67, %v71
    %vm74 = vcmask 261120
    %v76 = vsel %vm74, %v55, 0
    %v79 = vsel %vm74, %v56, 0
    %v82 = vsel %vm74, %v57, 0
    %v85 = vsel %vm74, %v58, 0
    %v88 = vsel %vm74, %v59, 0
    %v91 = vsel %vm74, %v60, 0
    %v94 = vsel %vm74, %v61, 0
    %v97 = vsel %vm74, %v62, 0
    %99 = vmatprep.subr.mxu0 0.0
    %100 = vmatpush1.msra.mxu0 0.0
    %101 = vmatprep.subr.mxu0 0.0
    %102 = vmatpush1.msra.mxu0 0.0
    %103 = vmatprep.subr.mxu0 0.0
    %104 = vmatpush1.msra.mxu0 0.0
    %105 = vmatprep.subr.mxu0 0.0
    %106 = vmatpush1.msra.mxu0 0.0
    %107 = vmatprep.subr.mxu0 0.0
    %108 = vmatpush1.msra.mxu0 0.0
    %109 = vmatprep.subr.mxu0 0.0
    %110 = vmatpush1.msra.mxu0 0.0
    %111 = vmatprep.subr.mxu0 0.0
    %112 = vmatpush1.msra.mxu0 0.0
    %113 = vmatprep.subr.mxu0 0.0
    %114 = vmatpush1.msra.mxu0 0.0
    %115 = vmatprep.subr.mxu0 0.0
    %116 = vmatpush1.msra.mxu0 0.0
    %117 = vmatprep.subr.mxu0 0.0
    %118 = vmatpush1.msra.mxu0 0.0
    %119 = vmatprep.subr.mxu0 0.0
    %120 = vmatpush1.msra.mxu0 0.0
    %121 = vmatprep.subr.mxu0 0.0
    %122 = vmatpush1.msra.mxu0 0.0
    %123 = vmatprep.subr.mxu0 0.0
    %124 = vmatpush1.msra.mxu0 %v66
    %125 = vmatprep.subr.mxu0 0.0
    %126 = vmatpush1.msra.mxu0 %v65
    %127 = vmatprep.subr.mxu0 0.0
    %128 = vmatpush1.msra.mxu0 %v64
    %129 = vmatprep.subr.mxu0 0.0
    %130 = vmatpush1.msra.mxu0 %v63
    %131 = vmatprep.subr.mxu0 0.0
    %132 = vmatpush2.msra.mxu0 0.0
    %133 = vmatprep.subr.mxu0 0.0
    %134 = vmatpush2.msra.mxu0 0.0
    %135 = vmatprep.subr.mxu0 0.0
    %136 = vmatpush2.msra.mxu0 0.0
    %137 = vmatprep.subr.mxu0 0.0
    %138 = vmatpush2.msra.mxu0 0.0
    %139 = vmatprep.subr.mxu0 0.0
    %140 = vmatpush2.msra.mxu0 0.0
    %141 = vmatprep.subr.mxu0 0.0
    %142 = vmatpush2.msra.mxu0 0.0
    %143 = vmatprep.subr.mxu0 0.0
    %144 = vmatpush2.msra.mxu0 0.0
    %145 = vmatprep.subr.mxu0 0.0
    %146 = vmatpush2.msra.mxu0 0.0
    %147 = vmatprep.subr.mxu0 0.0
    %148 = vmatpush2.msra.mxu0 0.0
    %149 = vmatprep.subr.mxu0 0.0
    %150 = vmatpush2.msra.mxu0 0.0
    %151 = vmatprep.subr.mxu0 0.0
    %152 = vmatpush2.msra.mxu0 0.0
    %153 = vmatprep.subr.mxu0 0.0
    %154 = vmatpush2.msra.mxu0 0.0
    %155 = vmatprep.subr.mxu0 0.0
    %156 = vmatpush2.msra.mxu0 0.0
    %157 = vmatprep.subr.mxu0 0.0
    %158 = vmatpush2.msra.mxu0 0.0
    %159 = vmatprep.subr.mxu0 0.0
    %160 = vmatpush2.msra.mxu0 0.0
    %161 = vmatprep.subr.mxu0 0.0
    %162 = vmatpush2.msra.mxu0 0.0
    %163 = vmatprep.mubr.f32.mxu0 0.0
    %164 = vmatmul.mubr.f32.gmra.mxu0 %v76
    %v165 = vpop.f32.mrf.mxu0
    %v166 = vadd.f32 %v72, %v165
    %v167 = vpop.f32.mrf.mxu0
    %168 = vmatprep.mubr.f32.mxu0 0.0
    %169 = vmatmul.mubr.f32.gmra.mxu0 %v79
    %v170 = vpop.f32.mrf.mxu0
    %v171 = vadd.f32 %v72, %v170
    %v172 = vpop.f32.mrf.mxu0
    %173 = vmatprep.mubr.f32.mxu0 0.0
    %174 = vmatmul.mubr.f32.gmra.mxu0 %v82
    %v175 = vpop.f32.mrf.mxu0
    %v176 = vadd.f32 %v72, %v175
    %v177 = vpop.f32.mrf.mxu0
    %178 = vmatprep.mubr.f32.mxu0 0.0
    %179 = vmatmul.mubr.f32.gmra.mxu0 %v85
    %v180 = vpop.f32.mrf.mxu0
    %v181 = vadd.f32 %v72, %v180
    %v182 = vpop.f32.mrf.mxu0
    %183 = vmatprep.mubr.f32.mxu0 0.0
    %184 = vmatmul.mubr.f32.gmra.mxu0 %v88
    %v185 = vpop.f32.mrf.mxu0
    %v186 = vadd.f32 %v72, %v185
    %v187 = vpop.f32.mrf.mxu0
    %188 = vmatprep.mubr.f32.mxu0 0.0
    %189 = vmatmul.mubr.f32.gmra.mxu0 %v91
    %v190 = vpop.f32.mrf.mxu0
    %v191 = vadd.f32 %v72, %v190
    %v192 = vpop.f32.mrf.mxu0
    %193 = vmatprep.mubr.f32.mxu0 0.0
    %194 = vmatmul.mubr.f32.gmra.mxu0 %v94
    %v195 = vpop.f32.mrf.mxu0
    %v196 = vadd.f32 %v72, %v195
    %v197 = vpop.f32.mrf.mxu0
    %198 = vmatprep.mubr.f32.mxu0 0.0
    %199 = vmatmul.mubr.f32.gmra.mxu0 %v97
    %v200 = vpop.f32.mrf.mxu0
    %v201 = vadd.f32 %v72, %v200
    %v202 = vpop.f32.mrf.mxu0
    %203 = vdwg.mxu0
    %v204 = vmax.f32 %v166, 0.0
    %v205 = vmax.f32 %v171, 0.0
    %v206 = vmax.f32 %v176, 0.0
    %v207 = vmax.f32 %v181, 0.0
    %v208 = vmax.f32 %v186, 0.0
    %v209 = vmax.f32 %v191, 0.0
    %v210 = vmax.f32 %v196, 0.0
    %v211 = vmax.f32 %v201, 0.0
    %v212 = vld [vmem:[#allocation2] sm:$0xff]
    %v213 = vld [vmem:[#allocation2 + $0x8] sm:$0xff]
    %v214 = vld [vmem:[#allocation2 + $0x10] sm:$0xff]
    %v215 = vld [vmem:[#allocation2 + $0x18] sm:$0xff]
    %v216 = vld [vmem:[#allocation2 + $0x20] sm:$0xff]
    %v217 = vld [vmem:[#allocation2 + $0x28] sm:$0xff]
    %v218 = vld [vmem:[#allocation2 + $0x30] sm:$0xff]
    %v219 = vld [vmem:[#allocation2 + $0x38] sm:$0xff]
    %v220 = vld [vmem:[#allocation2 + $0x40] sm:$0xff]
    %v221 = vld [vmem:[#allocation2 + $0x48] sm:$0xff]
    %v222 = vld [vmem:[#allocation2 + $0x50] sm:$0xff]
    %v223 = vld [vmem:[#allocation2 + $0x58] sm:$0xff]
    %v224 = vld [vmem:[#allocation2 + $0x60] sm:$0xff]
    %v225 = vld [vmem:[#allocation2 + $0x68] sm:$0xff]
    %v226 = vld [vmem:[#allocation2 + $0x70] sm:$0xff]
    %v227 = vld [vmem:[#allocation2 + $0x78] sm:$0xff]
    %v228 = vld [vmem:[%s5] sm:$0x1]
    %v230 = vlaneseq
    %v231 = vshrl.u32 %v230, 7
    %v232 = vsub.s32 0, %v231
    %v233 = vrot.slane %v228, %v232
    %235 = vmatprep.subr.mxu0 0.0
    %236 = vmatpush1.msra.mxu0 %v227
    %237 = vmatprep.subr.mxu0 0.0
    %238 = vmatpush1.msra.mxu0 %v226
    %239 = vmatprep.subr.mxu0 0.0
    %240 = vmatpush1.msra.mxu0 %v225
    %241 = vmatprep.subr.mxu0 0.0
    %242 = vmatpush1.msra.mxu0 %v224
    %243 = vmatprep.subr.mxu0 0.0
    %244 = vmatpush1.msra.mxu0 %v223
    %245 = vmatprep.subr.mxu0 0.0
    %246 = vmatpush1.msra.mxu0 %v222
    %247 = vmatprep.subr.mxu0 0.0
    %248 = vmatpush1.msra.mxu0 %v221
    %249 = vmatprep.subr.mxu0 0.0
    %250 = vmatpush1.msra.mxu0 %v220
    %251 = vmatprep.subr.mxu0 0.0
    %252 = vmatpush1.msra.mxu0 %v219
    %253 = vmatprep.subr.mxu0 0.0
    %254 = vmatpush1.msra.mxu0 %v218
    %255 = vmatprep.subr.mxu0 0.0
    %256 = vmatpush1.msra.mxu0 %v217
    %257 = vmatprep.subr.mxu0 0.0
    %258 = vmatpush1.msra.mxu0 %v216
    %259 = vmatprep.subr.mxu0 0.0
    %260 = vmatpush1.msra.mxu0 %v215
    %261 = vmatprep.subr.mxu0 0.0
    %262 = vmatpush1.msra.mxu0 %v214
    %263 = vmatprep.subr.mxu0 0.0
    %264 = vmatpush1.msra.mxu0 %v213
    %265 = vmatprep.subr.mxu0 0.0
    %266 = vmatpush1.msra.mxu0 %v212
    %267 = vmatprep.subr.mxu0 0.0
    %268 = vmatpush2.msra.mxu0 0.0
    %269 = vmatprep.subr.mxu0 0.0
    %270 = vmatpush2.msra.mxu0 0.0
    %271 = vmatprep.subr.mxu0 0.0
    %272 = vmatpush2.msra.mxu0 0.0
    %273 = vmatprep.subr.mxu0 0.0
    %274 = vmatpush2.msra.mxu0 0.0
    %275 = vmatprep.subr.mxu0 0.0
    %276 = vmatpush2.msra.mxu0 0.0
    %277 = vmatprep.subr.mxu0 0.0
    %278 = vmatpush2.msra.mxu0 0.0
    %279 = vmatprep.subr.mxu0 0.0
    %280 = vmatpush2.msra.mxu0 0.0
    %281 = vmatprep.subr.mxu0 0.0
    %282 = vmatpush2.msra.mxu0 0.0
    %283 = vmatprep.subr.mxu0 0.0
    %284 = vmatpush2.msra.mxu0 0.0
    %285 = vmatprep.subr.mxu0 0.0
    %286 = vmatpush2.msra.mxu0 0.0
    %287 = vmatprep.subr.mxu0 0.0
    %288 = vmatpush2.msra.mxu0 0.0
    %289 = vmatprep.subr.mxu0 0.0
    %290 = vmatpush2.msra.mxu0 0.0
    %291 = vmatprep.subr.mxu0 0.0
    %292 = vmatpush2.msra.mxu0 0.0
    %293 = vmatprep.subr.mxu0 0.0
    %294 = vmatpush2.msra.mxu0 0.0
    %295 = vmatprep.subr.mxu0 0.0
    %296 = vmatpush2.msra.mxu0 0.0
    %297 = vmatprep.subr.mxu0 0.0
    %298 = vmatpush2.msra.mxu0 0.0
    %299 = vmatprep.mubr.f32.mxu0 0.0
    %300 = vmatmul.mubr.f32.gmra.mxu0 %v204
    %v301 = vpop.f32.mrf.mxu0
    %v302 = vadd.f32 %v233, %v301
    %v303 = vpop.f32.mrf.mxu0
    %304 = vmatprep.mubr.f32.mxu0 0.0
    %305 = vmatmul.mubr.f32.gmra.mxu0 %v205
    %v306 = vpop.f32.mrf.mxu0
    %v307 = vadd.f32 %v233, %v306
    %v308 = vpop.f32.mrf.mxu0
    %309 = vmatprep.mubr.f32.mxu0 0.0
    %310 = vmatmul.mubr.f32.gmra.mxu0 %v206
    %v311 = vpop.f32.mrf.mxu0
    %v312 = vadd.f32 %v233, %v311
    %v313 = vpop.f32.mrf.mxu0
    %314 = vmatprep.mubr.f32.mxu0 0.0
    %315 = vmatmul.mubr.f32.gmra.mxu0 %v207
    %v316 = vpop.f32.mrf.mxu0
    %v317 = vadd.f32 %v233, %v316
    %v318 = vpop.f32.mrf.mxu0
    %319 = vmatprep.mubr.f32.mxu0 0.0
    %320 = vmatmul.mubr.f32.gmra.mxu0 %v208
    %v321 = vpop.f32.mrf.mxu0
    %v322 = vadd.f32 %v233, %v321
    %v323 = vpop.f32.mrf.mxu0
    %324 = vmatprep.mubr.f32.mxu0 0.0
    %325 = vmatmul.mubr.f32.gmra.mxu0 %v209
    %v326 = vpop.f32.mrf.mxu0
    %v327 = vadd.f32 %v233, %v326
    %v328 = vpop.f32.mrf.mxu0
    %329 = vmatprep.mubr.f32.mxu0 0.0
    %330 = vmatmul.mubr.f32.gmra.mxu0 %v210
    %v331 = vpop.f32.mrf.mxu0
    %v332 = vadd.f32 %v233, %v331
    %v333 = vpop.f32.mrf.mxu0
    %334 = vmatprep.mubr.f32.mxu0 0.0
    %335 = vmatmul.mubr.f32.gmra.mxu0 %v211
    %v336 = vpop.f32.mrf.mxu0
    %v337 = vadd.f32 %v233, %v336
    %v338 = vpop.f32.mrf.mxu0
    %339 = vdwg.mxu0
    %v340 = vmax.f32 %v302, 0.0
    %v341 = vmax.f32 %v307, 0.0
    %v342 = vmax.f32 %v312, 0.0
    %v343 = vmax.f32 %v317, 0.0
    %v344 = vmax.f32 %v322, 0.0
    %v345 = vmax.f32 %v327, 0.0
    %v346 = vmax.f32 %v332, 0.0
    %v347 = vmax.f32 %v337, 0.0
    %v348 = vld [vmem:[#allocation5] sm:$0xff]
    %v349 = vld [vmem:[#allocation5 + $0x8] sm:$0xff]
    %v350 = vld [vmem:[#allocation5 + $0x10] sm:$0xff]
    %v351 = vld [vmem:[#allocation5 + $0x18] sm:$0xff]
    %v352 = vld [vmem:[#allocation5 + $0x20] sm:$0xff]
    %v353 = vld [vmem:[#allocation5 + $0x28] sm:$0xff]
    %v354 = vld [vmem:[#allocation5 + $0x30] sm:$0xff]
    %v355 = vld [vmem:[#allocation5 + $0x38] sm:$0xff]
    %v356 = vld [vmem:[#allocation5 + $0x40] sm:$0xff]
    %v357 = vld [vmem:[#allocation5 + $0x48] sm:$0xff]
    %v358 = vld [vmem:[#allocation5 + $0x50] sm:$0xff]
    %v359 = vld [vmem:[#allocation5 + $0x58] sm:$0xff]
    %v360 = vld [vmem:[#allocation5 + $0x60] sm:$0xff]
    %v361 = vld [vmem:[#allocation5 + $0x68] sm:$0xff]
    %v362 = vld [vmem:[#allocation5 + $0x70] sm:$0xff]
    %v363 = vld [vmem:[#allocation5 + $0x78] sm:$0xff]
    %v364 = vld [vmem:[%s6] sm:$0x1]
    %v366 = vlaneseq
    %v367 = vshrl.u32 %v366, 7
    %v368 = vsub.s32 0, %v367
    %v369 = vrot.slane %v364, %v368
    %371 = vmatprep.subr.mxu0 0.0
    %372 = vmatpush1.msra.mxu0 %v363
    %373 = vmatprep.subr.mxu0 0.0
    %374 = vmatpush1.msra.mxu0 %v362
    %375 = vmatprep.subr.mxu0 0.0
    %376 = vmatpush1.msra.mxu0 %v361
    %377 = vmatprep.subr.mxu0 0.0
    %378 = vmatpush1.msra.mxu0 %v360
    %379 = vmatprep.subr.mxu0 0.0
    %380 = vmatpush1.msra.mxu0 %v359
    %381 = vmatprep.subr.mxu0 0.0
    %382 = vmatpush1.msra.mxu0 %v358
    %383 = vmatprep.subr.mxu0 0.0
    %384 = vmatpush1.msra.mxu0 %v357
    %385 = vmatprep.subr.mxu0 0.0
    %386 = vmatpush1.msra.mxu0 %v356
    %387 = vmatprep.subr.mxu0 0.0
    %388 = vmatpush1.msra.mxu0 %v355
    %389 = vmatprep.subr.mxu0 0.0
    %390 = vmatpush1.msra.mxu0 %v354
    %391 = vmatprep.subr.mxu0 0.0
    %392 = vmatpush1.msra.mxu0 %v353
    %393 = vmatprep.subr.mxu0 0.0
    %394 = vmatpush1.msra.mxu0 %v352
    %395 = vmatprep.subr.mxu0 0.0
    %396 = vmatpush1.msra.mxu0 %v351
    %397 = vmatprep.subr.mxu0 0.0
    %398 = vmatpush1.msra.mxu0 %v350
    %399 = vmatprep.subr.mxu0 0.0
    %400 = vmatpush1.msra.mxu0 %v349
    %401 = vmatprep.subr.mxu0 0.0
    %402 = vmatpush1.msra.mxu0 %v348
    %403 = vmatprep.subr.mxu0 0.0
    %404 = vmatpush2.msra.mxu0 0.0
    %405 = vmatprep.subr.mxu0 0.0
    %406 = vmatpush2.msra.mxu0 0.0
    %407 = vmatprep.subr.mxu0 0.0
    %408 = vmatpush2.msra.mxu0 0.0
    %409 = vmatprep.subr.mxu0 0.0
    %410 = vmatpush2.msra.mxu0 0.0
    %411 = vmatprep.subr.mxu0 0.0
    %412 = vmatpush2.msra.mxu0 0.0
    %413 = vmatprep.subr.mxu0 0.0
    %414 = vmatpush2.msra.mxu0 0.0
    %415 = vmatprep.subr.mxu0 0.0
    %416 = vmatpush2.msra.mxu0 0.0
    %417 = vmatprep.subr.mxu0 0.0
    %418 = vmatpush2.msra.mxu0 0.0
    %419 = vmatprep.subr.mxu0 0.0
    %420 = vmatpush2.msra.mxu0 0.0
    %421 = vmatprep.subr.mxu0 0.0
    %422 = vmatpush2.msra.mxu0 0.0
    %423 = vmatprep.subr.mxu0 0.0
    %424 = vmatpush2.msra.mxu0 0.0
    %425 = vmatprep.subr.mxu0 0.0
    %426 = vmatpush2.msra.mxu0 0.0
    %427 = vmatprep.subr.mxu0 0.0
    %428 = vmatpush2.msra.mxu0 0.0
    %429 = vmatprep.subr.mxu0 0.0
    %430 = vmatpush2.msra.mxu0 0.0
    %431 = vmatprep.subr.mxu0 0.0
    %432 = vmatpush2.msra.mxu0 0.0
    %433 = vmatprep.subr.mxu0 0.0
    %434 = vmatpush2.msra.mxu0 0.0
    %435 = vmatprep.mubr.f32.mxu0 0.0
    %436 = vmatmul.mubr.f32.gmra.mxu0 %v340
    %v437 = vpop.f32.mrf.mxu0
    %v438 = vadd.f32 %v369, %v437
    %v439 = vpop.f32.mrf.mxu0
    %440 = vmatprep.mubr.f32.mxu0 0.0
    %441 = vmatmul.mubr.f32.gmra.mxu0 %v341
    %v442 = vpop.f32.mrf.mxu0
    %v443 = vadd.f32 %v369, %v442
    %v444 = vpop.f32.mrf.mxu0
    %445 = vmatprep.mubr.f32.mxu0 0.0
    %446 = vmatmul.mubr.f32.gmra.mxu0 %v342
    %v447 = vpop.f32.mrf.mxu0
    %v448 = vadd.f32 %v369, %v447
    %v449 = vpop.f32.mrf.mxu0
    %450 = vmatprep.mubr.f32.mxu0 0.0
    %451 = vmatmul.mubr.f32.gmra.mxu0 %v343
    %v452 = vpop.f32.mrf.mxu0
    %v453 = vadd.f32 %v369, %v452
    %v454 = vpop.f32.mrf.mxu0
    %455 = vmatprep.mubr.f32.mxu0 0.0
    %456 = vmatmul.mubr.f32.gmra.mxu0 %v344
    %v457 = vpop.f32.mrf.mxu0
    %v458 = vadd.f32 %v369, %v457
    %v459 = vpop.f32.mrf.mxu0
    %460 = vmatprep.mubr.f32.mxu0 0.0
    %461 = vmatmul.mubr.f32.gmra.mxu0 %v345
    %v462 = vpop.f32.mrf.mxu0
    %v463 = vadd.f32 %v369, %v462
    %v464 = vpop.f32.mrf.mxu0
    %465 = vmatprep.mubr.f32.mxu0 0.0
    %466 = vmatmul.mubr.f32.gmra.mxu0 %v346
    %v467 = vpop.f32.mrf.mxu0
    %v468 = vadd.f32 %v369, %v467
    %v469 = vpop.f32.mrf.mxu0
    %470 = vmatprep.mubr.f32.mxu0 0.0
    %471 = vmatmul.mubr.f32.gmra.mxu0 %v347
    %v472 = vpop.f32.mrf.mxu0
    %v473 = vadd.f32 %v369, %v472
    %v474 = vpop.f32.mrf.mxu0
    %475 = vdwg.mxu0
    %v476 = vmax.f32 %v438, %v458
    %v477 = vmax.f32 %v443, %v463
    %v478 = vmax.f32 %v448, %v468
    %v479 = vmax.f32 %v453, %v473
    %v480 = vmax.f32 %v476, %v477
    %v481 = vmax.f32 %v478, %v479
    %v482 = vmax.f32 %v480, %v481
    %v483 = vrot.slane %v482, 4
    %v484 = vmax.f32 %v482, %v483
    %v485 = vrot.slane %v484, 2
    %v486 = vmax.f32 %v484, %v485
    %v487 = vrot.slane %v486, 1
    %v488 = vmax.f32 %v486, %v487
    %v489 = vsub.f32 %v438, %v488
    %v490 = vsub.f32 %v443, %v488
    %v491 = vsub.f32 %v448, %v488
    %v492 = vsub.f32 %v453, %v488
    %v493 = vsub.f32 %v458, %v488
    %v494 = vsub.f32 %v463, %v488
    %v495 = vsub.f32 %v468, %v488
    %v496 = vsub.f32 %v473, %v488
    %v497 = vmul.f32 %v489, 1.442695
    %v498 = vpow.pop %v497
    %v499 = vmul.f32 %v490, 1.442695
    %v500 = vpow.pop %v499
    %v501 = vmul.f32 %v491, 1.442695
    %v502 = vpow.pop %v501
    %v503 = vmul.f32 %v492, 1.442695
    %v504 = vpow.pop %v503
    %v505 = vmul.f32 %v493, 1.442695
    %v506 = vpow.pop %v505
    %v507 = vmul.f32 %v494, 1.442695
    %v508 = vpow.pop %v507
    %v509 = vmul.f32 %v495, 1.442695
    %v510 = vpow.pop %v509
    %v511 = vmul.f32 %v496, 1.442695
    %v512 = vpow.pop %v511
    %v513 = vadd.f32 %v498, %v500
    %v514 = vadd.f32 %v513, %v502
    %v515 = vadd.f32 %v514, %v504
    %v516 = vadd.f32 %v515, %v506
    %v517 = vadd.f32 %v516, %v508
    %v518 = vadd.f32 %v517, %v510
    %v519 = vadd.f32 %v518, %v512
    %v520 = vrot.slane %v519, 4
    %v521 = vadd.f32 %v519, %v520
    %v522 = vrot.slane %v521, 2
    %v523 = vadd.f32 %v521, %v522
    %v524 = vrot.slane %v523, 1
    %v525 = vadd.f32 %v523, %v524
    %v526 = vrcp.pop %v525
    %v527 = vmul.f32 %v498, %v526
    %v528 = vmul.f32 %v500, %v526
    %v529 = vmul.f32 %v502, %v526
    %v530 = vmul.f32 %v504, %v526
    %v531 = vmul.f32 %v506, %v526
    %v532 = vmul.f32 %v508, %v526
    %v533 = vmul.f32 %v510, %v526
    %v534 = vmul.f32 %v512, %v526
    %535 = vst [vmem:[#allocation7] sm:$0xff] %v527
    %536 = vst [vmem:[#allocation7 + $0x8] sm:$0xff] %v528
    %537 = vst [vmem:[#allocation7 + $0x10] sm:$0xff] %v529
    %538 = vst [vmem:[#allocation7 + $0x18] sm:$0xff] %v530
    %539 = vst [vmem:[#allocation7 + $0x20] sm:$0xff] %v531
    %540 = vst [vmem:[#allocation7 + $0x28] sm:$0xff] %v532
    %541 = vst [vmem:[#allocation7 + $0x30] sm:$0xff] %v533
    %542 = vst [vmem:[#allocation7 + $0x38] sm:$0xff] %v534
    // Predicated region
    $region38: #{tpu_custom_call.1} parent=1 // pred_check
      _
    $region39: #{tpu_custom_call.1} parent=1 // pred_check_branch
      %544 = sbr.rel (0) target = $region41
    $region40: #{tpu_custom_call.1} parent=1 // pred_region
      %s546 = ssub.s32 1024, 1024
      %547 = vsyncadd [#allocation4], %s546
      %s548 = sshll.u32 [#allocation7], 4
      %s549 = int_to_ptr.vmem [resolvable:$true] %s548
      %554 = dma.vmem_to_hbm [thread:$0]  %s549, 1024, %s7, [#allocation4], 128, 128, 8
    $region41: #{tpu_custom_call.1} parent=1 // pred_fallthru
      _
    // Predicated region
    $region42: #{tpu_custom_call.1} parent=1 // pred_check
      _
    $region43: #{tpu_custom_call.1} parent=1 // pred_check_branch
      %556 = sbr.rel (0) target = $region45
    $region44: #{tpu_custom_call.1} parent=1 // pred_region
      %557 = dma.done [#allocation4], 1024
    $region45: #{tpu_custom_call.1} parent=1 // pred_fallthru
      _
    %558 = vsyncpa [#allocation3], 1
    %559 = vsyncpa [#allocation6], 1
    %560 = vsyncpa [#allocation4], 1

</llo_original>
